<compile_context>
chip_gen: v7x
topology: tpu7x:2x2x1
jax: 0.10.0
libtpu: 0.0.40
codegen_flags: <defaults>
</compile_context>

<pallas_src>
import math

import jax
import jax.numpy as jnp
from jax.experimental import pallas as pl
from jax.experimental.pallas import tpu as pltpu


TARGET_BLOCK_BYTES = 4 * 1024 * 1024      # ~4 MiB (f32 working set) per grid step
VMEM_LIMIT_BYTES = 32 * 1024 * 1024
LANE_WIDTHS = (1024, 512, 256, 128)       # preferred lane-dense last dims


def mish_kernel(x_ref, o_ref):
    x = x_ref[...].astype(jnp.float32)
    # tanh(softplus(x)) rewritten as a rational function of t = exp(-|x|):
    #   x >= 0: (1 + 2t) / (1 + 2t + 2t^2)
    #   x <  0: (t^2 + 2t) / (t^2 + 2t + 2)
    # -> exactly one EUP transcendental (exp) + one divide per element,
    # numerically stable for all x and matching F.softplus/tanh to f32 rounding.
    t = jnp.exp(-jnp.abs(x))
    t2 = t * t
    pos = x >= 0.0
    num = jnp.where(pos, 1.0 + 2.0 * t, t2 + 2.0 * t)
    den = num + jnp.where(pos, 2.0 * t2, 2.0)
    o_ref[...] = (x * (num / den)).astype(o_ref.dtype)


def _sublane_multiple(dtype):
    """Minimum second-to-last-dim granularity for packed sub-32-bit dtypes."""
    itemsize = jnp.dtype(dtype).itemsize
    return max(8, 32 // itemsize)          # f32 -> 8, bf16/f16 -> 16, int8/fp8 -> 32


def _compiler_params():
    return pltpu.CompilerParams(
        dimension_semantics=("parallel",),
        vmem_limit_bytes=VMEM_LIMIT_BYTES,
    )


def _mish_2d(x2, dtype):
    rows, width = x2.shape
    sub = _sublane_multiple(dtype)
    # Size the block by its f32 working footprint (kernel upcasts to f32).
    work_itemsize = max(jnp.dtype(dtype).itemsize, 4)

    if rows <= sub:
        block_rows = rows                  # equals full dim -> always legal
    else:
        vmem_cap = max(sub, (TARGET_BLOCK_BYTES // (width * work_itemsize)) // sub * sub)
        # Keep >= 2 grid steps so the "parallel" axis can shard across v7x cores.
        split_cap = max(sub, (((rows + 1) // 2) // sub) * sub)
        block_rows = min(vmem_cap, split_cap)

    grid = (pl.cdiv(rows, block_rows),)
    return pl.pallas_call(
        mish_kernel,
        out_shape=jax.ShapeDtypeStruct((rows, width), dtype),
        grid_spec=pltpu.PrefetchScalarGridSpec(
            num_scalar_prefetch=0,
            grid=grid,
            in_specs=[pl.BlockSpec((block_rows, width), lambda i: (i, 0))],
            out_specs=pl.BlockSpec((block_rows, width), lambda i: (i, 0)),
        ),
        compiler_params=_compiler_params(),
    )(x2)


def _mish_1d(xf, dtype):
    (total,) = xf.shape
    work_itemsize = max(jnp.dtype(dtype).itemsize, 4)
    align = _sublane_multiple(dtype) * 128

    if total * work_itemsize <= TARGET_BLOCK_BYTES:
        block_elems = total                # single full block (equals full dim)
    else:
        block_elems = max(align, (TARGET_BLOCK_BYTES // work_itemsize) // align * align)

    grid = (pl.cdiv(total, block_elems),)
    return pl.pallas_call(
        mish_kernel,
        out_shape=jax.ShapeDtypeStruct((total,), dtype),
        grid_spec=pltpu.PrefetchScalarGridSpec(
            num_scalar_prefetch=0,
            grid=grid,
            in_specs=[pl.BlockSpec((block_elems,), lambda i: (i,))],
            out_specs=pl.BlockSpec((block_elems,), lambda i: (i,)),
        ),
        compiler_params=_compiler_params(),
    )(xf)


def mish(x):
    """Elementwise Mish activation: x * tanh(softplus(x)). Any shape, float dtype."""
    orig_shape = x.shape
    dtype = x.dtype
    total = math.prod(orig_shape)
    if total == 0:
        return x

    # Preferred path: lane-dense 2-D view (free reshape, no pad, no slice).
    for width in LANE_WIDTHS:
        if total % width == 0:
            out = _mish_2d(x.reshape(total // width, width), dtype)
            return out.reshape(orig_shape)

    # Ragged total (not a multiple of 128): flat 1-D view; Pallas masks the
    # boundary block, still no pad/slice HBM passes.
    out = _mish_1d(x.reshape(total), dtype)
    return out.reshape(orig_shape)


def mish_ref(x):
    """Pure-JAX reference mirroring the PyTorch MishActivation forward."""
    return x * jnp.tanh(jax.nn.softplus(x))


if __name__ == "__main__":
    # Small shape consistent with an activation module applied to a conv feature map.
    N, C, H, W = 2, 4, 16, 16

    key = jax.random.PRNGKey(0)
    x = jax.random.normal(key, (N, C, H, W), dtype=jnp.float32) * 3.0

    out = jax.block_until_ready(mish(x))

    ref = mish_ref(x)
    assert out.shape == (N, C, H, W)
    assert jnp.allclose(out, ref, atol=1e-5, rtol=1e-5), "mismatch vs reference"

    print("KERNEL_OK")
</pallas_src>

<mosaic_0001>
module attributes {stable_mosaic.version = 11 : i64} {
  func.func @mish_kernel(%arg0: i32, %arg1: memref<2x1024xf32, #tpu.memory_space<vmem>>, %arg2: memref<2x1024xf32, #tpu.memory_space<vmem>>) attributes {dimension_semantics = [#tpu.dimension_semantics<parallel>], iteration_bounds = array<i64: 1>, scalar_prefetch = 0 : i64, scratch_operands = 0 : i64, tpu.core_type = #tpu.core_type<tc>, window_params = [{transform_indices = @transform_0, window_bounds = array<i64: 2, 1024>}, {transform_indices = @transform_1, window_bounds = array<i64: 2, 1024>}]} {
    %c0 = arith.constant 0 : index
    %c0_0 = arith.constant 0 : index
    %0 = vector.load %arg1[%c0, %c0_0] : memref<2x1024xf32, #tpu.memory_space<vmem>>, vector<2x1024xf32>
    %1 = math.absf %0 : vector<2x1024xf32>
    %cst = arith.constant 0.000000e+00 : f32
    %2 = vector.broadcast %cst : f32 to vector<2x1024xf32>
    %3 = arith.subf %2, %1 : vector<2x1024xf32>
    %4 = math.exp %3 : vector<2x1024xf32>
    %5 = arith.mulf %4, %4 : vector<2x1024xf32>
    %cst_1 = arith.constant 0.000000e+00 : f32
    %6 = vector.broadcast %cst_1 : f32 to vector<2x1024xf32>
    %7 = arith.cmpf oge, %0, %6 : vector<2x1024xf32>
    %cst_2 = arith.constant 2.000000e+00 : f32
    %8 = vector.broadcast %cst_2 : f32 to vector<2x1024xf32>
    %9 = arith.mulf %8, %4 : vector<2x1024xf32>
    %cst_3 = arith.constant 1.000000e+00 : f32
    %10 = vector.broadcast %cst_3 : f32 to vector<2x1024xf32>
    %11 = arith.addf %10, %9 : vector<2x1024xf32>
    %cst_4 = arith.constant 2.000000e+00 : f32
    %12 = vector.broadcast %cst_4 : f32 to vector<2x1024xf32>
    %13 = arith.mulf %12, %4 : vector<2x1024xf32>
    %14 = arith.addf %5, %13 : vector<2x1024xf32>
    %15 = arith.select %7, %11, %14 : vector<2x1024xi1>, vector<2x1024xf32>
    %cst_5 = arith.constant 2.000000e+00 : f32
    %16 = vector.broadcast %cst_5 : f32 to vector<2x1024xf32>
    %17 = arith.mulf %16, %5 : vector<2x1024xf32>
    %cst_6 = arith.constant 2.000000e+00 : f32
    %18 = vector.broadcast %cst_6 : f32 to vector<2x1024xf32>
    %19 = arith.select %7, %17, %18 : vector<2x1024xi1>, vector<2x1024xf32>
    %20 = arith.addf %15, %19 : vector<2x1024xf32>
    %21 = arith.divf %15, %20 : vector<2x1024xf32>
    %22 = arith.mulf %0, %21 : vector<2x1024xf32>
    %c0_7 = arith.constant 0 : index
    %c0_8 = arith.constant 0 : index
    %23 = vector.load %arg2[%c0_7, %c0_8] : memref<2x1024xf32, #tpu.memory_space<vmem>>, vector<2x1024xf32>
    tpu.vector_store %arg2[%c0_7, %c0_8], %22 {strides = array<i32>} : memref<2x1024xf32, #tpu.memory_space<vmem>>, vector<2x1024xf32>,
    return
  }
  func.func @transform_0(%arg0: i32) -> (i32, i32) {
    %c0_i32 = arith.constant 0 : i32
    %c0_i32_0 = arith.constant 0 : i32
    return %arg0, %c0_i32 : i32, i32
  }
  func.func @transform_1(%arg0: i32) -> (i32, i32) {
    %c0_i32 = arith.constant 0 : i32
    %c0_i32_0 = arith.constant 0 : i32
    return %arg0, %c0_i32 : i32, i32
  }
}

</mosaic_0001>

<llo_original>
// kernel: tpu_custom_call.1
$region0: #{tpu_custom_call.1}
  #allocation0 [shape = 'u32[]', space=smem, size = 0x4, offset = 0x4, fixed_abs, tag = 'smem constant byte address 0x4 - core index']
  #allocation1 [shape = 'u32[144,128]{1,0:T(1,128)}', space=vmem, size = 0x12000, scoped, tag = 'internal scratch']
  %s0 = inlined_call_operand.hbm [shape: f32[2,1024], index: 0, kind: input, shape index: {}]
  %s1 = inlined_call_operand.hbm [shape: f32[2,1024], index: 1, kind: output, shape index: {}]
  %s2 = sld [smem:[#allocation0]]
  $region18: #{tpu_custom_call.1} parent=0
    _
  %s4 = ssub.s32 1, %s2
  %s5 = scalar_select 0, %s4, %s2
  $region1: #{tpu_custom_call.1} parent=0
    #allocation2 [shape = 'u8[8192]{0}', space=vmem, size = 0x2000, scoped, tag = 'input window, operand 0, single buffered']
    #allocation3 [shape = 's32[1]{0}', space=sflag, size = 0x4, scoped, tag = 'scoped memory for tpu_custom_call.1']
    #allocation4 [shape = 's32[1]{0}', space=sflag, size = 0x4, scoped, tag = 'scoped memory for tpu_custom_call.1']
    #allocation5 [shape = 'u8[8192]{0}', space=vmem, size = 0x2000, scoped, tag = 'output window, operand 0, single buffered']
    %6 = vsyncpa [#allocation3], 0
    %7 = vsyncpa [#allocation4], 0
    // Predicated region
    $region2: #{tpu_custom_call.1} parent=1 // pred_check
      _
    $region3: #{tpu_custom_call.1} parent=1 // pred_check_branch
      %9 = sbr.rel (0) target = $region5
    $region4: #{tpu_custom_call.1} parent=1 // pred_region
      %s11 = ssub.s32 256, 256
      %12 = vsyncadd [#allocation3], %s11
      %s14 = sshll.u32 [#allocation2], 4
      %s15 = int_to_ptr.vmem [resolvable:$true] %s14
      %17 = dma.hbm_to_vmem [thread:$0]  %s0, 256, %s15, [#allocation3]
    $region5: #{tpu_custom_call.1} parent=1 // pred_fallthru
      _
    // Predicated region
    $region6: #{tpu_custom_call.1} parent=1 // pred_check
      _
    $region7: #{tpu_custom_call.1} parent=1 // pred_check_branch
      %19 = sbr.rel (0) target = $region9
    $region8: #{tpu_custom_call.1} parent=1 // pred_region
      %20 = dma.done [#allocation3], 256
    $region9: #{tpu_custom_call.1} parent=1 // pred_fallthru
      _
    %v21 = vld [vmem:[#allocation2] sm:$0xff]
    %v22 = vld [vmem:[#allocation2 + $0x8] sm:$0xff]
    %v23 = vand.u32 2147483647, %v21
    %v24 = vand.u32 2147483647, %v22
    %v25 = vsub.f32 0.0, %v23
    %v26 = vsub.f32 0.0, %v24
    %v27 = vmul.f32 %v25, 1.442695
    %v28 = vpow.pop %v27
    %v29 = vmul.f32 %v26, 1.442695
    %v30 = vpow.pop %v29
    %v31 = vmul.f32 %v28, %v28
    %v32 = vmul.f32 %v30, %v30
    %vm33 = vcmp.ge.f32.partialorder %v21, 0.0
    %vm34 = vcmp.ge.f32.partialorder %v22, 0.0
    %v35 = vmul.f32 %v28, 2.0
    %v36 = vmul.f32 %v30, 2.0
    %v37 = vadd.f32 %v35, 1.0
    %v38 = vadd.f32 %v36, 1.0
    %v39 = vadd.f32 %v31, %v35
    %v40 = vadd.f32 %v32, %v36
    %v41 = vsel %vm33, %v37, %v39
    %v42 = vsel %vm34, %v38, %v40
    %v43 = vmul.f32 %v31, 2.0
    %v44 = vmul.f32 %v32, 2.0
    %v45 = vsel %vm33, %v43, 2.0
    %v46 = vsel %vm34, %v44, 2.0
    %v47 = vadd.f32 %v41, %v45
    %v48 = vadd.f32 %v42, %v46
    %v49 = vrcp.pop %v47
    %v50 = vmul.f32 %v41, %v49
    %v51 = vrcp.pop %v48
    %v52 = vmul.f32 %v42, %v51
    %v53 = vmul.f32 %v21, %v50
    %v54 = vmul.f32 %v22, %v52
    %55 = vst [vmem:[#allocation5] sm:$0xff] %v53
    %56 = vst [vmem:[#allocation5 + $0x8] sm:$0xff] %v54
    // Predicated region
    $region10: #{tpu_custom_call.1} parent=1 // pred_check
      _
    $region11: #{tpu_custom_call.1} parent=1 // pred_check_branch
      %58 = sbr.rel (0) target = $region13
    $region12: #{tpu_custom_call.1} parent=1 // pred_region
      %s60 = ssub.s32 256, 256
      %61 = vsyncadd [#allocation4], %s60
      %s63 = sshll.u32 [#allocation5], 4
      %s64 = int_to_ptr.vmem [resolvable:$true] %s63
      %66 = dma.vmem_to_hbm [thread:$0]  %s64, 256, %s1, [#allocation4]
    $region13: #{tpu_custom_call.1} parent=1 // pred_fallthru
      _
    // Predicated region
    $region14: #{tpu_custom_call.1} parent=1 // pred_check
      _
    $region15: #{tpu_custom_call.1} parent=1 // pred_check_branch
      %68 = sbr.rel (0) target = $region17
    $region16: #{tpu_custom_call.1} parent=1 // pred_region
      %69 = dma.done [#allocation4], 256
    $region17: #{tpu_custom_call.1} parent=1 // pred_fallthru
      _
    %70 = vsyncpa [#allocation3], 1
    %71 = vsyncpa [#allocation4], 1

</llo_original>
